<compile_context>
chip_gen: v5e
topology: v5e:2x2
jax: 0.10.0
libtpu: 0.0.40
codegen_flags: <defaults>
</compile_context>

<pallas_src>
import functools

import jax
import jax.numpy as jnp
from jax.experimental import pallas as pl
from jax.experimental.pallas import tpu as pltpu


def _round_up(v, m):
    return -(-v // m) * m


def _gat3_kernel(x_ref, mask_ref, wl_ref, bl_ref, wr_ref, br_ref, att_ref,
                 bias_ref, out_ref, h_ref, *, d_pad, dh_pad, tile_j):
    """All GATv2Conv layers (+ReLU) fused; hidden state carried in VMEM scratch.

    Grid axis 0 = layer index ("arbitrary": layers are sequential). Per-layer
    parameters are DMA'd (and pipelined) per grid step; x and the int8 adjacency
    mask keep a constant block index, so they are fetched from HBM exactly once.
    """
    layer = pl.program_id(0)

    # Layer 0: seed the resident hidden state with the (padded) input features.
    @pl.when(layer == 0)
    def _():
        h_ref[...] = x_ref[...]

    h_bf = h_ref[...].astype(jnp.bfloat16)                    # (Np, DHp)
    wl = wl_ref[0]                                            # (DHp, Dp) bf16
    wr = wr_ref[0]
    xl = jnp.dot(h_bf, wl, preferred_element_type=jnp.float32) + bl_ref[0]  # (Np, Dp)
    xr = jnp.dot(h_bf, wr, preferred_element_type=jnp.float32) + br_ref[0]  # (Np, Dp)

    att = att_ref[0]                                          # (1, Dp) f32
    n_pad = xr.shape[0]

    # GATv2 logits e[i, j] = att . leaky_relu(xr[i] + xl[j]), computed in j-tiles so
    # only an (Np, TJ, Dp) chunk is ever live (never the full (N, N, D) tensor).
    num_jb = -(-n_pad // tile_j)
    e_chunks = []
    for jb in range(num_jb):
        xl_j = xl[jb * tile_j:(jb + 1) * tile_j, :]           # (tj, Dp), static slice
        s = xr[:, None, :] + xl_j[None, :, :]                 # (Np, tj, Dp)
        s = jnp.where(s >= 0, s, 0.2 * s)                     # leaky_relu, slope 0.2
        e_chunks.append(jnp.sum(s * att[None, :, :], axis=-1))  # (Np, tj)
    e = e_chunks[0] if num_jb == 1 else jnp.concatenate(e_chunks, axis=1)

    # Masked softmax over neighbours j (self-loops guarantee non-empty rows).
    adj = mask_ref[...].astype(jnp.float32) > 0.0             # int8 -> bool
    e = jnp.where(adj, e, jnp.float32(-1e30))
    m = jnp.max(e, axis=-1, keepdims=True)
    p = jnp.where(adj, jnp.exp(e - m), 0.0)
    inv_denom = pl.reciprocal(jnp.sum(p, axis=-1, keepdims=True), approx=True)
    alpha = p * inv_denom                                     # (Np, Np)

    # Aggregate messages x_j = xl[j] on the MXU (bf16 in, f32 acc), + bias, ReLU.
    agg = jnp.dot(alpha.astype(jnp.bfloat16), xl.astype(jnp.bfloat16),
                  preferred_element_type=jnp.float32)
    h_new = jnp.maximum(agg + bias_ref[0], 0.0)               # (Np, Dp)

    # Carry to the next layer in VMEM (no HBM traffic between layers).
    if dh_pad == d_pad:
        h_ref[...] = h_new
    else:
        h_ref[:, :d_pad] = h_new   # extra cols only hit zero-padded weight rows next layer

    # Only the last layer materializes the output block (single HBM writeback).
    @pl.when(layer == pl.num_programs(0) - 1)
    def _():
        out_ref[...] = h_new


def build_mask(edge_index, n_pad):
    """Dense int8 adjacency: mask[i, j] = 1 iff node i aggregates from node j.

    flow='target_to_source' => i = edge_index[0], j = edge_index[1].
    add_self_loops=True => diagonal forced to 1 (also for padded rows, keeping their
    softmax finite; padded nodes never appear as neighbours of real nodes).
    Note: duplicate (i, j) edges are deduplicated by the dense formulation.
    """
    mask = jnp.zeros((n_pad, n_pad), jnp.int8)
    mask = mask.at[edge_index[0], edge_index[1]].set(1)
    diag = jnp.arange(n_pad)
    mask = mask.at[diag, diag].set(1)
    return mask


def gat_conv_embedding_pallas(x, edge_index, edge_attr, params):
    """x: (N, F) f32, edge_index: (2, E) int32. edge_attr accepted for parity but unused
    (the PyTorch module never forwards edge_attr into its GATv2Conv layers)."""
    del edge_attr
    n, f_in = x.shape
    d = params[0]["wl"].shape[1]
    n_layers = len(params)

    n_pad = _round_up(max(n, 8), 8)
    d_pad = _round_up(d, 128)                       # lane-dense output / MXU N dim
    dh_pad = _round_up(max(f_in, d), 128)           # lane-dense hidden / MXU K dim

    # j-tile: keep the (Np, tile_j, Dp) f32 logits chunk bounded (<= ~6 MiB).
    tile_j = min(128, n_pad)
    max_tj = (6 * 1024 * 1024) // (n_pad * d_pad * 4)
    tile_j = max(8, min(tile_j, (max_tj // 8) * 8 if max_tj >= 8 else 8))

    # Pad node features once; zero-padded rows/cols line up with zero-padded weight rows.
    x_p = jnp.zeros((n_pad, dh_pad), jnp.float32).at[:n, :f_in].set(x)

    def pad_w(w):  # (in_dim, d) -> (dh_pad, d_pad) bf16 (cast happened in-kernel anyway)
        wp = jnp.zeros((dh_pad, d_pad), jnp.float32).at[:w.shape[0], :w.shape[1]].set(w)
        return wp.astype(jnp.bfloat16)

    def pad_b(b):  # (1, d) -> (1, d_pad) f32
        return jnp.zeros((1, d_pad), jnp.float32).at[:, :b.shape[1]].set(b)

    wl = jnp.stack([pad_w(p["wl"]) for p in params])       # (L, DHp, Dp) bf16
    wr = jnp.stack([pad_w(p["wr"]) for p in params])
    bl = jnp.stack([pad_b(p["bl"]) for p in params])        # (L, 1, Dp) f32
    br = jnp.stack([pad_b(p["br"]) for p in params])
    att = jnp.stack([pad_b(p["att"]) for p in params])
    bias = jnp.stack([pad_b(p["bias"]) for p in params])

    mask = build_mask(edge_index, n_pad)                    # (Np, Np) int8

    kernel = functools.partial(_gat3_kernel, d_pad=d_pad, dh_pad=dh_pad, tile_j=tile_j)
    full2d = lambda shape: pl.BlockSpec(shape, lambda L: (0, 0))
    per_layer = lambda shape: pl.BlockSpec((1,) + shape, lambda L: (L, 0, 0))

    out = pl.pallas_call(
        kernel,
        out_shape=jax.ShapeDtypeStruct((n_pad, d_pad), jnp.float32),
        grid=(n_layers,),
        in_specs=[
            full2d((n_pad, dh_pad)),        # x           (constant block -> fetched once)
            full2d((n_pad, n_pad)),         # int8 mask   (constant block -> fetched once)
            per_layer((dh_pad, d_pad)),     # wl  (bf16, pipelined per layer)
            per_layer((1, d_pad)),          # bl
            per_layer((dh_pad, d_pad)),     # wr  (bf16)
            per_layer((1, d_pad)),          # br
            per_layer((1, d_pad)),          # att
            per_layer((1, d_pad)),          # bias
        ],
        out_specs=full2d((n_pad, d_pad)),
        scratch_shapes=[pltpu.VMEM((n_pad, dh_pad), jnp.float32)],   # resident hidden state
        compiler_params=pltpu.CompilerParams(
            dimension_semantics=("arbitrary",)),   # layers depend on each other
    )(x_p, mask, wl, bl, wr, br, att, bias)
    return out[:n, :d]


# ----- parameter init (matches GATv2Conv, heads=1) -----
def _glorot(key, shape):
    fan_in, fan_out = shape[0], shape[1]
    limit = (6.0 / (fan_in + fan_out)) ** 0.5
    return jax.random.uniform(key, shape, jnp.float32, -limit, limit)


def init_gatv2_params(key, in_dim, out_dim):
    """lin_l, lin_r (glorot weight, zero bias), att (glorot), output bias (zero)."""
    k1, k2, k3 = jax.random.split(key, 3)
    return dict(
        wl=_glorot(k1, (in_dim, out_dim)),        # lin_l.weight^T
        bl=jnp.zeros((1, out_dim), jnp.float32),  # lin_l.bias
        wr=_glorot(k2, (in_dim, out_dim)),        # lin_r.weight^T
        br=jnp.zeros((1, out_dim), jnp.float32),  # lin_r.bias
        att=_glorot(k3, (1, out_dim)),            # att (1, heads, D) with heads=1
        bias=jnp.zeros((1, out_dim), jnp.float32))


# ----- pure-JAX f32 reference for correctness checking -----
def _gatv2_layer_ref(x, p, mask):
    xl = x @ p["wl"] + p["bl"]
    xr = x @ p["wr"] + p["br"]
    s = xr[:, None, :] + xl[None, :, :]
    s = jnp.where(s >= 0, s, 0.2 * s)
    e = jnp.sum(s * p["att"][None, :, :], axis=-1)
    e = jnp.where(mask, e, -1e30)
    e = e - jnp.max(e, axis=-1, keepdims=True)
    pr = jnp.where(mask, jnp.exp(e), 0.0)
    alpha = pr / jnp.sum(pr, axis=-1, keepdims=True)
    return jnp.maximum(alpha @ xl + p["bias"], 0.0)


def gat_conv_embedding_ref(x, edge_index, edge_attr, params):
    del edge_attr
    mask = build_mask(edge_index, x.shape[0]) > 0
    h = x
    for p in params:
        h = _gatv2_layer_ref(h, p, mask)
    return h


if __name__ == "__main__":
    node_features = 4
    embedding_dim = 32
    num_nodes = 16
    num_edges = 40

    key = jax.random.PRNGKey(0)
    kx, ke, ka, kp1, kp2, kp3 = jax.random.split(key, 6)

    x = jax.random.normal(kx, (num_nodes, node_features), jnp.float32)
    edge_index = jax.random.randint(ke, (2, num_edges), 0, num_nodes, jnp.int32)
    edge_attr = jax.random.normal(ka, (num_edges, 3), jnp.float32)  # unused by forward

    params = [
        init_gatv2_params(kp1, node_features, embedding_dim),
        init_gatv2_params(kp2, embedding_dim, embedding_dim),
        init_gatv2_params(kp3, embedding_dim, embedding_dim),
    ]

    fwd = jax.jit(gat_conv_embedding_pallas)
    out = jax.block_until_ready(fwd(x, edge_index, edge_attr, params))

    ref = gat_conv_embedding_ref(x, edge_index, edge_attr, params)
    assert out.shape == (num_nodes, embedding_dim)
    # bf16 MXU matmuls + approx reciprocal vs f32 reference -> loosened tolerance.
    assert jnp.allclose(out, ref, atol=5e-2, rtol=5e-2), "mismatch vs JAX reference"

    print("KERNEL_OK")
</pallas_src>

<mosaic_0001>
module attributes {stable_mosaic.version = 11 : i64} {
  func.func @_gat3_kernel(%arg0: i32, %arg1: memref<16x128xf32, #tpu.memory_space<vmem>>, %arg2: memref<16x16xi8, #tpu.memory_space<vmem>>, %arg3: memref<1x128x128xbf16, #tpu.memory_space<vmem>>, %arg4: memref<1x1x128xf32, #tpu.memory_space<vmem>>, %arg5: memref<1x128x128xbf16, #tpu.memory_space<vmem>>, %arg6: memref<1x1x128xf32, #tpu.memory_space<vmem>>, %arg7: memref<1x1x128xf32, #tpu.memory_space<vmem>>, %arg8: memref<1x1x128xf32, #tpu.memory_space<vmem>>, %arg9: memref<16x128xf32, #tpu.memory_space<vmem>>, %arg10: memref<16x128xf32, #tpu.memory_space<vmem>>) attributes {dimension_semantics = [#tpu.dimension_semantics<arbitrary>], iteration_bounds = array<i64: 3>, scalar_prefetch = 0 : i64, scratch_operands = 1 : i64, tpu.core_type = #tpu.core_type<tc>, window_params = [{pipeline_mode = #tpu.pipeline_mode<synchronous>, transform_indices = @transform_0, window_bounds = array<i64: 16, 128>}, {pipeline_mode = #tpu.pipeline_mode<synchronous>, transform_indices = @transform_1, window_bounds = array<i64: 16, 16>}, {transform_indices = @transform_2, window_bounds = array<i64: 1, 128, 128>}, {transform_indices = @transform_3, window_bounds = array<i64: 1, 1, 128>}, {transform_indices = @transform_4, window_bounds = array<i64: 1, 128, 128>}, {transform_indices = @transform_5, window_bounds = array<i64: 1, 1, 128>}, {transform_indices = @transform_6, window_bounds = array<i64: 1, 1, 128>}, {transform_indices = @transform_7, window_bounds = array<i64: 1, 1, 128>}, {pipeline_mode = #tpu.pipeline_mode<synchronous>, transform_indices = @transform_8, window_bounds = array<i64: 16, 128>}]} {
    %c0_i32 = arith.constant 0 : i32
    %0 = arith.cmpi eq, %arg0, %c0_i32 : i32
    %1 = arith.extui %0 : i1 to i32
    %c0_i32_0 = arith.constant 0 : i32
    %2 = arith.cmpi ne, %1, %c0_i32_0 : i32
    scf.if %2 {
      %c0_36 = arith.constant 0 : index
      %c0_37 = arith.constant 0 : index
      %66 = vector.load %arg1[%c0_36, %c0_37] : memref<16x128xf32, #tpu.memory_space<vmem>>, vector<16x128xf32>
      %c0_38 = arith.constant 0 : index
      %c0_39 = arith.constant 0 : index
      %67 = vector.load %arg10[%c0_38, %c0_39] : memref<16x128xf32, #tpu.memory_space<vmem>>, vector<16x128xf32>
      tpu.vector_store %arg10[%c0_38, %c0_39], %66 {strides = array<i32>} : memref<16x128xf32, #tpu.memory_space<vmem>>, vector<16x128xf32>,
    } else {
    }
    %c0 = arith.constant 0 : index
    %c0_1 = arith.constant 0 : index
    %3 = vector.load %arg10[%c0, %c0_1] : memref<16x128xf32, #tpu.memory_space<vmem>>, vector<16x128xf32>
    %4 = arith.truncf %3 : vector<16x128xf32> to vector<16x128xbf16>
    %c0_2 = arith.constant 0 : index
    %c0_3 = arith.constant 0 : index
    %c0_4 = arith.constant 0 : index
    %5 = vector.load %arg3[%c0_2, %c0_3, %c0_4] : memref<1x128x128xbf16, #tpu.memory_space<vmem>>, vector<1x128x128xbf16>
    %6 = vector.shape_cast %5 : vector<1x128x128xbf16> to vector<128x128xbf16>
    %c0_5 = arith.constant 0 : index
    %c0_6 = arith.constant 0 : index
    %c0_7 = arith.constant 0 : index
    %7 = vector.load %arg5[%c0_5, %c0_6, %c0_7] : memref<1x128x128xbf16, #tpu.memory_space<vmem>>, vector<1x128x128xbf16>
    %8 = vector.shape_cast %7 : vector<1x128x128xbf16> to vector<128x128xbf16>
    %cst = arith.constant dense<0.000000e+00> : vector<16x128xf32>
    %9 = tpu.matmul %4, %6, %cst {dimension_numbers = #tpu.dot_dimension_numbers<[1], [0], [0], [1], [0, 0, 1, 1], [], []>} : vector<16x128xbf16>, vector<128x128xbf16>, vector<16x128xf32> -> vector<16x128xf32>
    %c0_8 = arith.constant 0 : index
    %c0_9 = arith.constant 0 : index
    %c0_10 = arith.constant 0 : index
    %10 = vector.load %arg4[%c0_8, %c0_9, %c0_10] : memref<1x1x128xf32, #tpu.memory_space<vmem>>, vector<1x1x128xf32>
    %11 = vector.shape_cast %10 : vector<1x1x128xf32> to vector<1x128xf32>
    %12 = vector.broadcast %11 : vector<1x128xf32> to vector<16x128xf32>
    %13 = arith.addf %9, %12 : vector<16x128xf32>
    %cst_11 = arith.constant dense<0.000000e+00> : vector<16x128xf32>
    %14 = tpu.matmul %4, %8, %cst_11 {dimension_numbers = #tpu.dot_dimension_numbers<[1], [0], [0], [1], [0, 0, 1, 1], [], []>} : vector<16x128xbf16>, vector<128x128xbf16>, vector<16x128xf32> -> vector<16x128xf32>
    %c0_12 = arith.constant 0 : index
    %c0_13 = arith.constant 0 : index
    %c0_14 = arith.constant 0 : index
    %15 = vector.load %arg6[%c0_12, %c0_13, %c0_14] : memref<1x1x128xf32, #tpu.memory_space<vmem>>, vector<1x1x128xf32>
    %16 = vector.shape_cast %15 : vector<1x1x128xf32> to vector<1x128xf32>
    %17 = vector.broadcast %16 : vector<1x128xf32> to vector<16x128xf32>
    %18 = arith.addf %14, %17 : vector<16x128xf32>
    %c0_15 = arith.constant 0 : index
    %c0_16 = arith.constant 0 : index
    %c0_17 = arith.constant 0 : index
    %19 = vector.load %arg7[%c0_15, %c0_16, %c0_17] : memref<1x1x128xf32, #tpu.memory_space<vmem>>, vector<1x1x128xf32>
    %20 = vector.shape_cast %19 : vector<1x1x128xf32> to vector<1x128xf32>
    %21 = vector.shape_cast %18 : vector<16x128xf32> to vector<16x1x128xf32>
    %22 = vector.shape_cast %13 : vector<16x128xf32> to vector<1x16x128xf32>
    %23 = vector.broadcast %21 : vector<16x1x128xf32> to vector<16x16x128xf32>
    %24 = vector.broadcast %22 : vector<1x16x128xf32> to vector<16x16x128xf32>
    %25 = arith.addf %23, %24 : vector<16x16x128xf32>
    %cst_18 = arith.constant 0.000000e+00 : f32
    %26 = vector.broadcast %cst_18 : f32 to vector<16x16x128xf32>
    %27 = arith.cmpf oge, %25, %26 : vector<16x16x128xf32>
    %cst_19 = arith.constant 2.000000e-01 : f32
    %28 = vector.broadcast %cst_19 : f32 to vector<16x16x128xf32>
    %29 = arith.mulf %28, %25 : vector<16x16x128xf32>
    %30 = arith.select %27, %25, %29 : vector<16x16x128xi1>, vector<16x16x128xf32>
    %31 = vector.shape_cast %20 : vector<1x128xf32> to vector<1x1x128xf32>
    %32 = vector.broadcast %31 : vector<1x1x128xf32> to vector<16x16x128xf32>
    %33 = arith.mulf %30, %32 : vector<16x16x128xf32>
    %cst_20 = arith.constant dense<0.000000e+00> : vector<16x16xf32>
    %34 = vector.multi_reduction <add>, %33, %cst_20 [2] : vector<16x16x128xf32> to vector<16x16xf32>
    %c0_21 = arith.constant 0 : index
    %c0_22 = arith.constant 0 : index
    %35 = vector.load %arg2[%c0_21, %c0_22] : memref<16x16xi8, #tpu.memory_space<vmem>>, vector<16x16xi8>
    %36 = arith.sitofp %35 : vector<16x16xi8> to vector<16x16xf32>
    %cst_23 = arith.constant 0.000000e+00 : f32
    %37 = vector.broadcast %cst_23 : f32 to vector<16x16xf32>
    %38 = arith.cmpf ogt, %36, %37 : vector<16x16xf32>
    %cst_24 = arith.constant -1.000000e+30 : f32
    %39 = vector.broadcast %cst_24 : f32 to vector<16x16xf32>
    %40 = arith.select %38, %34, %39 : vector<16x16xi1>, vector<16x16xf32>
    %cst_25 = arith.constant dense<0xFF800000> : vector<16xf32>
    %41 = vector.multi_reduction <maximumf>, %40, %cst_25 [1] : vector<16x16xf32> to vector<16xf32>
    %42 = vector.shape_cast %41 : vector<16xf32> to vector<16x1xf32>
    %43 = vector.broadcast %42 : vector<16x1xf32> to vector<16x16xf32>
    %44 = arith.subf %40, %43 : vector<16x16xf32>
    %45 = math.exp %44 : vector<16x16xf32>
    %cst_26 = arith.constant 0.000000e+00 : f32
    %46 = vector.broadcast %cst_26 : f32 to vector<16x16xf32>
    %47 = arith.select %38, %45, %46 : vector<16x16xi1>, vector<16x16xf32>
    %cst_27 = arith.constant dense<0.000000e+00> : vector<16xf32>
    %48 = vector.multi_reduction <add>, %47, %cst_27 [1] : vector<16x16xf32> to vector<16xf32>
    %49 = vector.shape_cast %48 : vector<16xf32> to vector<16x1xf32>
    %50 = tpu.reciprocal %49 {approx = true} : vector<16x1xf32> -> vector<16x1xf32>
    %51 = vector.broadcast %50 : vector<16x1xf32> to vector<16x16xf32>
    %52 = arith.mulf %47, %51 : vector<16x16xf32>
    %53 = arith.truncf %52 : vector<16x16xf32> to vector<16x16xbf16>
    %54 = arith.truncf %13 : vector<16x128xf32> to vector<16x128xbf16>
    %cst_28 = arith.constant dense<0.000000e+00> : vector<16x128xf32>
    %55 = tpu.matmul %53, %54, %cst_28 {dimension_numbers = #tpu.dot_dimension_numbers<[1], [0], [0], [1], [0, 0, 1, 1], [], []>} : vector<16x16xbf16>, vector<16x128xbf16>, vector<16x128xf32> -> vector<16x128xf32>
    %c0_29 = arith.constant 0 : index
    %c0_30 = arith.constant 0 : index
    %c0_31 = arith.constant 0 : index
    %56 = vector.load %arg8[%c0_29, %c0_30, %c0_31] : memref<1x1x128xf32, #tpu.memory_space<vmem>>, vector<1x1x128xf32>
    %57 = vector.shape_cast %56 : vector<1x1x128xf32> to vector<1x128xf32>
    %58 = vector.broadcast %57 : vector<1x128xf32> to vector<16x128xf32>
    %59 = arith.addf %55, %58 : vector<16x128xf32>
    %cst_32 = arith.constant 0.000000e+00 : f32
    %60 = vector.broadcast %cst_32 : f32 to vector<16x128xf32>
    %61 = arith.maximumf %59, %60 : vector<16x128xf32>
    %c0_33 = arith.constant 0 : index
    %c0_34 = arith.constant 0 : index
    %62 = vector.load %arg10[%c0_33, %c0_34] : memref<16x128xf32, #tpu.memory_space<vmem>>, vector<16x128xf32>
    tpu.vector_store %arg10[%c0_33, %c0_34], %61 {strides = array<i32>} : memref<16x128xf32, #tpu.memory_space<vmem>>, vector<16x128xf32>,
    %c2_i32 = arith.constant 2 : i32
    %63 = arith.cmpi eq, %arg0, %c2_i32 : i32
    %64 = arith.extui %63 : i1 to i32
    %c0_i32_35 = arith.constant 0 : i32
    %65 = arith.cmpi ne, %64, %c0_i32_35 : i32
    scf.if %65 {
      %c0_36 = arith.constant 0 : index
      %c0_37 = arith.constant 0 : index
      %66 = vector.load %arg9[%c0_36, %c0_37] : memref<16x128xf32, #tpu.memory_space<vmem>>, vector<16x128xf32>
      tpu.vector_store %arg9[%c0_36, %c0_37], %61 {strides = array<i32>} : memref<16x128xf32, #tpu.memory_space<vmem>>, vector<16x128xf32>,
    } else {
    }
    return
  }
  func.func @transform_0(%arg0: i32) -> (i32, i32) {
    %c0_i32 = arith.constant 0 : i32
    %c0_i32_0 = arith.constant 0 : i32
    %c0_i32_1 = arith.constant 0 : i32
    return %c0_i32, %c0_i32_0 : i32, i32
  }
  func.func @transform_1(%arg0: i32) -> (i32, i32) {
    %c0_i32 = arith.constant 0 : i32
    %c0_i32_0 = arith.constant 0 : i32
    %c0_i32_1 = arith.constant 0 : i32
    return %c0_i32, %c0_i32_0 : i32, i32
  }
  func.func @transform_2(%arg0: i32) -> (i32, i32, i32) {
    %c0_i32 = arith.constant 0 : i32
    %c0_i32_0 = arith.constant 0 : i32
    %c0_i32_1 = arith.constant 0 : i32
    return %arg0, %c0_i32, %c0_i32_0 : i32, i32, i32
  }
  func.func @transform_3(%arg0: i32) -> (i32, i32, i32) {
    %c0_i32 = arith.constant 0 : i32
    %c0_i32_0 = arith.constant 0 : i32
    %c0_i32_1 = arith.constant 0 : i32
    return %arg0, %c0_i32, %c0_i32_0 : i32, i32, i32
  }
  func.func @transform_4(%arg0: i32) -> (i32, i32, i32) {
    %c0_i32 = arith.constant 0 : i32
    %c0_i32_0 = arith.constant 0 : i32
    %c0_i32_1 = arith.constant 0 : i32
    return %arg0, %c0_i32, %c0_i32_0 : i32, i32, i32
  }
  func.func @transform_5(%arg0: i32) -> (i32, i32, i32) {
    %c0_i32 = arith.constant 0 : i32
    %c0_i32_0 = arith.constant 0 : i32
    %c0_i32_1 = arith.constant 0 : i32
    return %arg0, %c0_i32, %c0_i32_0 : i32, i32, i32
  }
  func.func @transform_6(%arg0: i32) -> (i32, i32, i32) {
    %c0_i32 = arith.constant 0 : i32
    %c0_i32_0 = arith.constant 0 : i32
    %c0_i32_1 = arith.constant 0 : i32
    return %arg0, %c0_i32, %c0_i32_0 : i32, i32, i32
  }
  func.func @transform_7(%arg0: i32) -> (i32, i32, i32) {
    %c0_i32 = arith.constant 0 : i32
    %c0_i32_0 = arith.constant 0 : i32
    %c0_i32_1 = arith.constant 0 : i32
    return %arg0, %c0_i32, %c0_i32_0 : i32, i32, i32
  }
  func.func @transform_8(%arg0: i32) -> (i32, i32) {
    %c0_i32 = arith.constant 0 : i32
    %c0_i32_0 = arith.constant 0 : i32
    %c0_i32_1 = arith.constant 0 : i32
    return %c0_i32, %c0_i32_0 : i32, i32
  }
}

</mosaic_0001>

<llo_original>
// kernel: gat_conv_embedding_pallas.1
$region0: #{gat_conv_embedding_pallas.1}
  #allocation0 [shape = 'u32[]', space=smem, size = 0x4, offset = 0x4, fixed_abs, tag = 'smem constant byte address 0x4 - core index']
  #allocation1 [shape = 'u32[72,128]{1,0:T(1,128)}', space=vmem, size = 0x9000, scoped, tag = 'internal scratch']
  #allocation2 [shape = 'f32[16,128]{1,0:T(8,128)}', space=vmem, size = 0x2000, scoped, tag = 'scratch operand']
  %s0 = inlined_call_operand.vmem [shape: f32[16,128], index: 0, kind: input, shape index: {}]
  %s1 = inlined_call_operand.vmem [shape: s8[16,16], index: 1, kind: input, shape index: {}]
  %s2 = inlined_call_operand.vmem [shape: bf16[3,128,128], index: 2, kind: input, shape index: {}]
  %s3 = inlined_call_operand.vmem [shape: f32[3,1,128], index: 3, kind: input, shape index: {}]
  %s4 = inlined_call_operand.vmem [shape: bf16[3,128,128], index: 4, kind: input, shape index: {}]
  %s5 = inlined_call_operand.vmem [shape: f32[3,1,128], index: 5, kind: input, shape index: {}]
  %s6 = inlined_call_operand.vmem [shape: f32[3,1,128], index: 6, kind: input, shape index: {}]
  %s7 = inlined_call_operand.vmem [shape: f32[3,1,128], index: 7, kind: input, shape index: {}]
  %s8 = inlined_call_operand.hbm [shape: f32[16,128], index: 8, kind: output, shape index: {}]
  %s9 = sld [smem:[#allocation0]]
  $region73: #{gat_conv_embedding_pallas.1} parent=0
    _
  %s11 = ssub.s32 1, %s9
  %s12 = scalar_select 0, %s11, %s9
  $region1: #{gat_conv_embedding_pallas.1} parent=0
    #allocation3 [shape = 'u8[8192]{0}', space=vmem, size = 0x2000, scoped, tag = 'output window, operand 0, single buffered']
    #allocation4 [shape = 's32[2]{0}', space=sflag, size = 0x8, scoped, tag = 'scoped memory for gat_conv_embedding_pallas.1']
    %13 = vsyncpa [#allocation4], 0
    loop: start=0, step=1, limit=5
    $region2: #{gat_conv_embedding_pallas.1} parent=1 // loop_pre_header
      _
    $region3: #{gat_conv_embedding_pallas.1} parent=1 // loop_header
      %s15 = sphi 0, %s19
      %p16 = scmp.ge.s32.totalorder %s15, 5
      %s23 = sphi 0, %s23
      %s25 = sphi 0, %s23
      %s26 = sphi 0, %s25
      %s40 = sphi 0, %s26
      %s44 = sphi 0, %s44
      %s46 = sphi 0, %s44
      %s47 = sphi 0, %s46
      %s61 = sphi 0, %s47
      %s67 = sphi 0, %s69
      %s70 = sphi 0, %s67
      %s71 = sphi 0, %s70
      %s87 = sphi 0, %s71
      %s93 = sphi 0, %s95
      %s96 = sphi 0, %s93
      %s97 = sphi 0, %s96
      %s113 = sphi 0, %s97
      %s119 = sphi 0, %s121
      %s122 = sphi 0, %s119
      %s123 = sphi 0, %s122
      %s139 = sphi 0, %s123
      %s145 = sphi 0, %s147
      %s148 = sphi 0, %s145
      %s149 = sphi 0, %s148
      %s165 = sphi 0, %s149
      %s171 = sphi 0, %s173
      %s174 = sphi 0, %s171
      %s175 = sphi 0, %s174
      %s191 = sphi 0, %s175
      %s197 = sphi 0, %s199
      %s200 = sphi 0, %s197
      %s201 = sphi 0, %s200
      %s217 = sphi 0, %s201
      %s221 = sphi 0, %s221
      %s223 = sphi 0, %s221
      %s224 = sphi 0, %s223
      %s238 = sphi 0, %s224
    $region4: #{gat_conv_embedding_pallas.1} parent=1 // loop_header_branch
      %18 = sbr.rel (%p16) target = $region8
    $region5: #{gat_conv_embedding_pallas.1} parent=1 // loop_body
      %s20 = ssub.s32 %s15, 1
      %s21 = ssub.s32 %s15, 2
      %s22 = sadd.s32 %s15, 1
      %s24 = sadd.s32 %s23, 1
      %p27 = scmp.eq.s32.totalorder %s15, 2
      %p28 = scmp.ne.s32.totalorder %s23, %s25
      %p29 = scmp.eq.s32.totalorder %s15, 0
      %p30 = por %p28, %p29
      %p31 = scmp.ne.s32.totalorder %s23, %s25
      %p32 = scmp.eq.s32.totalorder %s20, 2
      %p33 = por %p31, %p32
      %p34 = scmp.ne.s32.totalorder %s25, %s26
      %p35 = scmp.eq.s32.totalorder %s20, 0
      %p36 = por %p34, %p35
      %p37 = scmp.ne.s32.totalorder %s25, %s26
      %p38 = scmp.eq.s32.totalorder %s21, 2
      %p39 = por %p37, %p38
      %p41 = scmp.ne.s32.totalorder %s26, %s40
      %p42 = scmp.eq.s32.totalorder %s21, 0
      %p43 = por %p41, %p42
      %s45 = sadd.s32 %s44, 1
      %p48 = scmp.eq.s32.totalorder %s15, 2
      %p49 = scmp.ne.s32.totalorder %s44, %s46
      %p50 = scmp.eq.s32.totalorder %s15, 0
      %p51 = por %p49, %p50
      %p52 = scmp.ne.s32.totalorder %s44, %s46
      %p53 = scmp.eq.s32.totalorder %s20, 2
      %p54 = por %p52, %p53
      %p55 = scmp.ne.s32.totalorder %s46, %s47
      %p56 = scmp.eq.s32.totalorder %s20, 0
      %p57 = por %p55, %p56
      %p58 = scmp.ne.s32.totalorder %s46, %s47
      %p59 = scmp.eq.s32.totalorder %s21, 2
      %p60 = por %p58, %p59
      %p62 = scmp.ne.s32.totalorder %s47, %s61
      %p63 = scmp.eq.s32.totalorder %s21, 0
      %p64 = por %p62, %p63
      %s65 = ssub.s32 %s15, %s22
      %p66 = scmp.eq.s32.totalorder %s65, 0
      %s68 = sadd.s32 %s67, 1
      %s69 = scalar_select %p66, %s67, %s68
      %p72 = pneg %p66
      %p73 = scmp.eq.s32.totalorder %s15, 2
      %p74 = por %p72, %p73
      %p75 = scmp.ne.s32.totalorder %s67, %s70
      %p76 = scmp.eq.s32.totalorder %s15, 0
      %p77 = por %p75, %p76
      %p78 = scmp.ne.s32.totalorder %s67, %s70
      %p79 = scmp.eq.s32.totalorder %s20, 2
      %p80 = por %p78, %p79
      %p81 = scmp.ne.s32.totalorder %s70, %s71
      %p82 = scmp.eq.s32.totalorder %s20, 0
      %p83 = por %p81, %p82
      %p84 = scmp.ne.s32.totalorder %s70, %s71
      %p85 = scmp.eq.s32.totalorder %s21, 2
      %p86 = por %p84, %p85
      %p88 = scmp.ne.s32.totalorder %s71, %s87
      %p89 = scmp.eq.s32.totalorder %s21, 0
      %p90 = por %p88, %p89
      %s91 = ssub.s32 %s15, %s22
      %p92 = scmp.eq.s32.totalorder %s91, 0
      %s94 = sadd.s32 %s93, 1
      %s95 = scalar_select %p92, %s93, %s94
      %p98 = pneg %p92
      %p99 = scmp.eq.s32.totalorder %s15, 2
      %p100 = por %p98, %p99
      %p101 = scmp.ne.s32.totalorder %s93, %s96
      %p102 = scmp.eq.s32.totalorder %s15, 0
      %p103 = por %p101, %p102
      %p104 = scmp.ne.s32.totalorder %s93, %s96
      %p105 = scmp.eq.s32.totalorder %s20, 2
      %p106 = por %p104, %p105
      %p107 = scmp.ne.s32.totalorder %s96, %s97
      %p108 = scmp.eq.s32.totalorder %s20, 0
      %p109 = por %p107, %p108
      %p110 = scmp.ne.s32.totalorder %s96, %s97
      %p111 = scmp.eq.s32.totalorder %s21, 2
      %p112 = por %p110, %p111
      %p114 = scmp.ne.s32.totalorder %s97, %s113
      %p115 = scmp.eq.s32.totalorder %s21, 0
      %p116 = por %p114, %p115
      %s117 = ssub.s32 %s15, %s22
      %p118 = scmp.eq.s32.totalorder %s117, 0
      %s120 = sadd.s32 %s119, 1
      %s121 = scalar_select %p118, %s119, %s120
      %p124 = pneg %p118
      %p125 = scmp.eq.s32.totalorder %s15, 2
      %p126 = por %p124, %p125
      %p127 = scmp.ne.s32.totalorder %s119, %s122
      %p128 = scmp.eq.s32.totalorder %s15, 0
      %p129 = por %p127, %p128
      %p130 = scmp.ne.s32.totalorder %s119, %s122
      %p131 = scmp.eq.s32.totalorder %s20, 2
      %p132 = por %p130, %p131
      %p133 = scmp.ne.s32.totalorder %s122, %s123
      %p134 = scmp.eq.s32.totalorder %s20, 0
      %p135 = por %p133, %p134
      %p136 = scmp.ne.s32.totalorder %s122, %s123
      %p137 = scmp.eq.s32.totalorder %s21, 2
      %p138 = por %p136, %p137
      %p140 = scmp.ne.s32.totalorder %s123, %s139
      %p141 = scmp.eq.s32.totalorder %s21, 0
      %p142 = por %p140, %p141
      %s143 = ssub.s32 %s15, %s22
      %p144 = scmp.eq.s32.totalorder %s143, 0
      %s146 = sadd.s32 %s145, 1
      %s147 = scalar_select %p144, %s145, %s146
      %p150 = pneg %p144
      %p151 = scmp.eq.s32.totalorder %s15, 2
      %p152 = por %p150, %p151
      %p153 = scmp.ne.s32.totalorder %s145, %s148
      %p154 = scmp.eq.s32.totalorder %s15, 0
      %p155 = por %p153, %p154
      %p156 = scmp.ne.s32.totalorder %s145, %s148
      %p157 = scmp.eq.s32.totalorder %s20, 2
      %p158 = por %p156, %p157
      %p159 = scmp.ne.s32.totalorder %s148, %s149
      %p160 = scmp.eq.s32.totalorder %s20, 0
      %p161 = por %p159, %p160
      %p162 = scmp.ne.s32.totalorder %s148, %s149
      %p163 = scmp.eq.s32.totalorder %s21, 2
      %p164 = por %p162, %p163
      %p166 = scmp.ne.s32.totalorder %s149, %s165
      %p167 = scmp.eq.s32.totalorder %s21, 0
      %p168 = por %p166, %p167
      %s169 = ssub.s32 %s15, %s22
      %p170 = scmp.eq.s32.totalorder %s169, 0
      %s172 = sadd.s32 %s171, 1
      %s173 = scalar_select %p170, %s171, %s172
      %p176 = pneg %p170
      %p177 = scmp.eq.s32.totalorder %s15, 2
      %p178 = por %p176, %p177
      %p179 = scmp.ne.s32.totalorder %s171, %s174
      %p180 = scmp.eq.s32.totalorder %s15, 0
      %p181 = por %p179, %p180
      %p182 = scmp.ne.s32.totalorder %s171, %s174
      %p183 = scmp.eq.s32.totalorder %s20, 2
      %p184 = por %p182, %p183
      %p185 = scmp.ne.s32.totalorder %s174, %s175
      %p186 = scmp.eq.s32.totalorder %s20, 0
      %p187 = por %p185, %p186
      %p188 = scmp.ne.s32.totalorder %s174, %s175
      %p189 = scmp.eq.s32.totalorder %s21, 2
      %p190 = por %p188, %p189
      %p192 = scmp.ne.s32.totalorder %s175, %s191
      %p193 = scmp.eq.s32.totalorder %s21, 0
      %p194 = por %p192, %p193
      %s195 = ssub.s32 %s15, %s22
      %p196 = scmp.eq.s32.totalorder %s195, 0
      %s198 = sadd.s32 %s197, 1
      %s199 = scalar_select %p196, %s197, %s198
      %p202 = pneg %p196
      %p203 = scmp.eq.s32.totalorder %s15, 2
      %p204 = por %p202, %p203
      %p205 = scmp.ne.s32.totalorder %s197, %s200
      %p206 = scmp.eq.s32.totalorder %s15, 0
      %p207 = por %p205, %p206
      %p208 = scmp.ne.s32.totalorder %s197, %s200
      %p209 = scmp.eq.s32.totalorder %s20, 2
      %p210 = por %p208, %p209
      %p211 = scmp.ne.s32.totalorder %s200, %s201
      %p212 = scmp.eq.s32.totalorder %s20, 0
      %p213 = por %p211, %p212
      %p214 = scmp.ne.s32.totalorder %s200, %s201
      %p215 = scmp.eq.s32.totalorder %s21, 2
      %p216 = por %p214, %p215
      %p218 = scmp.ne.s32.totalorder %s201, %s217
      %p219 = scmp.eq.s32.totalorder %s21, 0
      %p220 = por %p218, %p219
      %s222 = sadd.s32 %s221, 1
      %p225 = scmp.eq.s32.totalorder %s15, 2
      %p226 = scmp.ne.s32.totalorder %s221, %s223
      %p227 = scmp.eq.s32.totalorder %s15, 0
      %p228 = por %p226, %p227
      %p229 = scmp.ne.s32.totalorder %s221, %s223
      %p230 = scmp.eq.s32.totalorder %s20, 2
      %p231 = por %p229, %p230
      %p232 = scmp.ne.s32.totalorder %s223, %s224
      %p233 = scmp.eq.s32.totalorder %s20, 0
      %p234 = por %p232, %p233
      %p235 = scmp.ne.s32.totalorder %s223, %s224
      %p236 = scmp.eq.s32.totalorder %s21, 2
      %p237 = por %p235, %p236
      %p239 = scmp.ne.s32.totalorder %s224, %s238
      %p240 = scmp.eq.s32.totalorder %s21, 0
      %p241 = por %p239, %p240
      %p242 = scmp.le.s32.totalorder 1, %s15
      %p243 = scmp.lt.s32.totalorder %s15, 4
      %p244 = pnand %p242, %p243
      %p245 = pneg %p244
      // Predicated region
      $region9: #{gat_conv_embedding_pallas.1} parent=5 // pred_check
        _
      $region10: #{gat_conv_embedding_pallas.1} parent=5 // pred_check_branch
        %247 = sbr.rel (%p244) target = $region12
      $region11: #{gat_conv_embedding_pallas.1} parent=5 // pred_region
        %s248 = ssub.s32 %s15, 1
        // Predicated region
        $region13: #{gat_conv_embedding_pallas.1} parent=11 // pred_check
          %p249 = pneg %p36
        $region14: #{gat_conv_embedding_pallas.1} parent=11 // pred_check_branch
          %251 = sbr.rel (%p249) target = $region16
        $region15: #{gat_conv_embedding_pallas.1} parent=11 // pred_region
          _
        $region16: #{gat_conv_embedding_pallas.1} parent=11 // pred_fallthru
          _
        // Predicated region
        $region17: #{gat_conv_embedding_pallas.1} parent=11 // pred_check
          %p252 = pneg %p57
        $region18: #{gat_conv_embedding_pallas.1} parent=11 // pred_check_branch
          %254 = sbr.rel (%p252) target = $region20
        $region19: #{gat_conv_embedding_pallas.1} parent=11 // pred_region
          _
        $region20: #{gat_conv_embedding_pallas.1} parent=11 // pred_fallthru
          _
      $region12: #{gat_conv_embedding_pallas.1} parent=5 // pred_fallthru
        _
      %p255 = scmp.lt.s32.totalorder %s15, 3
      // Predicated region
      $region21: #{gat_conv_embedding_pallas.1} parent=5 // pred_check
        %p256 = pneg %p255
      $region22: #{gat_conv_embedding_pallas.1} parent=5 // pred_check_branch
        %258 = sbr.rel (%p256) target = $region24
      $region23: #{gat_conv_embedding_pallas.1} parent=5 // pred_region
        // Predicated region
        $region25: #{gat_conv_embedding_pallas.1} parent=23 // pred_check
          %p259 = pneg %p77
        $region26: #{gat_conv_embedding_pallas.1} parent=23 // pred_check_branch
          %261 = sbr.rel (%p259) target = $region28
        $region27: #{gat_conv_embedding_pallas.1} parent=23 // pred_region
          %p262 = scmp.lt.s32.totalorder %s15, 2
          %s263 = scalar_select %p262, %s15, 2
          %s264 = smul.addr %s263, 16
          %s265 = smul.addr %s264, 4
          %s266 = scalar_lea.vmem %s2, %s265
        $region28: #{gat_conv_embedding_pallas.1} parent=23 // pred_fallthru
          _
        // Predicated region
        $region29: #{gat_conv_embedding_pallas.1} parent=23 // pred_check
          %p267 = pneg %p103
        $region30: #{gat_conv_embedding_pallas.1} parent=23 // pred_check_branch
          %269 = sbr.rel (%p267) target = $region32
        $region31: #{gat_conv_embedding_pallas.1} parent=23 // pred_region
          %p270 = scmp.lt.s32.totalorder %s15, 2
          %s271 = scalar_select %p270, %s15, 2
          %s272 = scalar_lea.vmem %s3, %s271
        $region32: #{gat_conv_embedding_pallas.1} parent=23 // pred_fallthru
          _
        // Predicated region
        $region33: #{gat_conv_embedding_pallas.1} parent=23 // pred_check
          %p273 = pneg %p129
        $region34: #{gat_conv_embedding_pallas.1} parent=23 // pred_check_branch
          %275 = sbr.rel (%p273) target = $region36
        $region35: #{gat_conv_embedding_pallas.1} parent=23 // pred_region
          %p276 = scmp.lt.s32.totalorder %s15, 2
          %s277 = scalar_select %p276, %s15, 2
          %s278 = smul.addr %s277, 16
          %s279 = smul.addr %s278, 4
          %s280 = scalar_lea.vmem %s4, %s279
        $region36: #{gat_conv_embedding_pallas.1} parent=23 // pred_fallthru
          _
        // Predicated region
        $region37: #{gat_conv_embedding_pallas.1} parent=23 // pred_check
          %p281 = pneg %p155
        $region38: #{gat_conv_embedding_pallas.1} parent=23 // pred_check_branch
          %283 = sbr.rel (%p281) target = $region40
        $region39: #{gat_conv_embedding_pallas.1} parent=23 // pred_region
          %p284 = scmp.lt.s32.totalorder %s15, 2
          %s285 = scalar_select %p284, %s15, 2
          %s286 = scalar_lea.vmem %s5, %s285
        $region40: #{gat_conv_embedding_pallas.1} parent=23 // pred_fallthru
          _
        // Predicated region
        $region41: #{gat_conv_embedding_pallas.1} parent=23 // pred_check
          %p287 = pneg %p181
        $region42: #{gat_conv_embedding_pallas.1} parent=23 // pred_check_branch
          %289 = sbr.rel (%p287) target = $region44
        $region43: #{gat_conv_embedding_pallas.1} parent=23 // pred_region
          %p290 = scmp.lt.s32.totalorder %s15, 2
          %s291 = scalar_select %p290, %s15, 2
          %s292 = scalar_lea.vmem %s6, %s291
        $region44: #{gat_conv_embedding_pallas.1} parent=23 // pred_fallthru
          _
        // Predicated region
        $region45: #{gat_conv_embedding_pallas.1} parent=23 // pred_check
          %p293 = pneg %p207
        $region46: #{gat_conv_embedding_pallas.1} parent=23 // pred_check_branch
          %295 = sbr.rel (%p293) target = $region48
        $region47: #{gat_conv_embedding_pallas.1} parent=23 // pred_region
          %p296 = scmp.lt.s32.totalorder %s15, 2
          %s297 = scalar_select %p296, %s15, 2
          %s298 = scalar_lea.vmem %s7, %s297
        $region48: #{gat_conv_embedding_pallas.1} parent=23 // pred_fallthru
          _
      $region24: #{gat_conv_embedding_pallas.1} parent=5 // pred_fallthru
        _
      %p299 = scmp.le.s32.totalorder 1, %s15
      %p300 = scmp.lt.s32.totalorder %s15, 4
      %p301 = pnand %p299, %p300
      %p302 = pneg %p301
      // Predicated region
      $region49: #{gat_conv_embedding_pallas.1} parent=5 // pred_check
        _
      $region50: #{gat_conv_embedding_pallas.1} parent=5 // pred_check_branch
        %304 = sbr.rel (%p301) target = $region52
      $region51: #{gat_conv_embedding_pallas.1} parent=5 // pred_region
        %s305 = ssub.s32 %s15, 1
        %p306 = pneg %p36
        %p307 = pneg %p33
        %p308 = pneg %p57
        %p309 = pneg %p54
        %p310 = scmp.lt.s32.totalorder %s20, 2
        %s311 = scalar_select %p310, %s20, 2
        %s312 = smul.addr %s311, 16
        %s313 = smul.addr %s312, 4
        %s314 = scalar_lea.vmem %s2, %s313
        %p315 = pneg %p83
        %p316 = pneg %p80
        %p317 = scmp.lt.s32.totalorder %s20, 2
        %s318 = scalar_select %p317, %s20, 2
        %s319 = scalar_lea.vmem %s3, %s318
        %p320 = pneg %p109
        %p321 = pneg %p106
        %p322 = scmp.lt.s32.totalorder %s20, 2
        %s323 = scalar_select %p322, %s20, 2
        %s324 = smul.addr %s323, 16
        %s325 = smul.addr %s324, 4
        %s326 = scalar_lea.vmem %s4, %s325
        %p327 = pneg %p135
        %p328 = pneg %p132
        %p329 = scmp.lt.s32.totalorder %s20, 2
        %s330 = scalar_select %p329, %s20, 2
        %s331 = scalar_lea.vmem %s5, %s330
        %p332 = pneg %p161
        %p333 = pneg %p158
        %p334 = scmp.lt.s32.totalorder %s20, 2
        %s335 = scalar_select %p334, %s20, 2
        %s336 = scalar_lea.vmem %s6, %s335
        %p337 = pneg %p187
        %p338 = pneg %p184
        %p339 = scmp.lt.s32.totalorder %s20, 2
        %s340 = scalar_select %p339, %s20, 2
        %s341 = scalar_lea.vmem %s7, %s340
        %p342 = pneg %p213
        %p343 = pneg %p210
        %p344 = pneg %p234
        %p345 = pneg %p231
        %p346 = scmp.lt.s32.totalorder %s20, 2
        %s347 = scalar_select %p346, %s20, 2
        %s348 = smul.addr %s347, 16
        %s349 = smul.addr %s348, 4
        %s350 = scalar_lea.vmem %s2, %s349
        %p351 = scmp.lt.s32.totalorder %s20, 2
        %s352 = scalar_select %p351, %s20, 2
        %s353 = scalar_lea.vmem %s3, %s352
        %p354 = scmp.lt.s32.totalorder %s20, 2
        %s355 = scalar_select %p354, %s20, 2
        %s356 = smul.addr %s355, 16
        %s357 = smul.addr %s356, 4
        %s358 = scalar_lea.vmem %s4, %s357
        %p359 = scmp.lt.s32.totalorder %s20, 2
        %s360 = scalar_select %p359, %s20, 2
        %s361 = scalar_lea.vmem %s5, %s360
        %p362 = scmp.lt.s32.totalorder %s20, 2
        %s363 = scalar_select %p362, %s20, 2
        %s364 = scalar_lea.vmem %s6, %s363
        %p365 = scmp.lt.s32.totalorder %s20, 2
        %s366 = scalar_select %p365, %s20, 2
        %s367 = scalar_lea.vmem %s7, %s366
        %p369 = scmp.eq.s32.totalorder %s20, 0
        // Predicated region
        $region53: #{gat_conv_embedding_pallas.1} parent=51 // pred_check
          %p370 = pneg %p369
        $region54: #{gat_conv_embedding_pallas.1} parent=51 // pred_check_branch
          %372 = sbr.rel (%p370) target = $region56
        $region55: #{gat_conv_embedding_pallas.1} parent=51 // pred_region
          %v373 = vld [vmem:[%s0] sm:$0xff]
          %v374 = vld [vmem:[%s0 + $0x8] sm:$0xff]
          %375 = vst [vmem:[#allocation2] sm:$0xff] %v373
          %376 = vst [vmem:[#allocation2 + $0x8] sm:$0xff] %v374
        $region56: #{gat_conv_embedding_pallas.1} parent=51 // pred_fallthru
          _
        %v377 = vld [vmem:[#allocation2] sm:$0xff]
        %v378 = vld [vmem:[#allocation2 + $0x8] sm:$0xff]
        %v379 = vpack.c.bf16 %v378, %v377
        %v380 = vld [vmem:[%s350] sm:$0xf]
        %v381 = vld [vmem:[%s350 + $0x4] sm:$0xf]
        %v382 = vld [vmem:[%s350 + $0x8] sm:$0xf]
        %v383 = vld [vmem:[%s350 + $0xc] sm:$0xf]
        %v384 = vld [vmem:[%s350 + $0x10] sm:$0xf]
        %v385 = vld [vmem:[%s350 + $0x14] sm:$0xf]
        %v386 = vld [vmem:[%s350 + $0x18] sm:$0xf]
        %v387 = vld [vmem:[%s350 + $0x1c] sm:$0xf]
        %v388 = vld [vmem:[%s350 + $0x20] sm:$0xf]
        %v389 = vld [vmem:[%s350 + $0x24] sm:$0xf]
        %v390 = vld [vmem:[%s350 + $0x28] sm:$0xf]
        %v391 = vld [vmem:[%s350 + $0x2c] sm:$0xf]
        %v392 = vld [vmem:[%s350 + $0x30] sm:$0xf]
        %v393 = vld [vmem:[%s350 + $0x34] sm:$0xf]
        %v394 = vld [vmem:[%s350 + $0x38] sm:$0xf]
        %v395 = vld [vmem:[%s350 + $0x3c] sm:$0xf]
        %v396 = vld [vmem:[%s358] sm:$0xf]
        %v397 = vld [vmem:[%s358 + $0x4] sm:$0xf]
        %v398 = vld [vmem:[%s358 + $0x8] sm:$0xf]
        %v399 = vld [vmem:[%s358 + $0xc] sm:$0xf]
        %v400 = vld [vmem:[%s358 + $0x10] sm:$0xf]
        %v401 = vld [vmem:[%s358 + $0x14] sm:$0xf]
        %v402 = vld [vmem:[%s358 + $0x18] sm:$0xf]
        %v403 = vld [vmem:[%s358 + $0x1c] sm:$0xf]
        %v404 = vld [vmem:[%s358 + $0x20] sm:$0xf]
        %v405 = vld [vmem:[%s358 + $0x24] sm:$0xf]
        %v406 = vld [vmem:[%s358 + $0x28] sm:$0xf]
        %v407 = vld [vmem:[%s358 + $0x2c] sm:$0xf]
        %v408 = vld [vmem:[%s358 + $0x30] sm:$0xf]
        %v409 = vld [vmem:[%s358 + $0x34] sm:$0xf]
        %v410 = vld [vmem:[%s358 + $0x38] sm:$0xf]
        %v411 = vld [vmem:[%s358 + $0x3c] sm:$0xf]
        %v412 = vld [vmem:[%s353] sm:$0x1]
        %v414 = vperm.slane %v412, 0
        %v432 = vunpack.c.l.b16 %v380
        %v433 = vunpack.c.l.b16 %v381
        %v434 = vunpack.c.l.b16 %v382
        %v435 = vunpack.c.l.b16 %v383
        %v436 = vunpack.c.l.b16 %v384
        %v437 = vunpack.c.l.b16 %v385
        %v438 = vunpack.c.l.b16 %v386
        %v439 = vunpack.c.l.b16 %v387
        %v440 = vunpack.c.l.b16 %v388
        %v441 = vunpack.c.l.b16 %v389
        %v442 = vunpack.c.l.b16 %v390
        %v443 = vunpack.c.l.b16 %v391
        %v444 = vunpack.c.l.b16 %v392
        %v445 = vunpack.c.l.b16 %v393
        %v446 = vunpack.c.l.b16 %v394
        %v447 = vunpack.c.l.b16 %v395
        %v448 = vpack.c.b16 %v433, %v432
        %v449 = vpack.c.b16 %v435, %v434
        %v450 = vpack.c.b16 %v437, %v436
        %v451 = vpack.c.b16 %v439, %v438
        %v452 = vpack.c.b16 %v441, %v440
        %v453 = vpack.c.b16 %v443, %v442
        %v454 = vpack.c.b16 %v445, %v444
        %v455 = vpack.c.b16 %v447, %v446
        %464 = vmatpush.bf16.msra.mxu0 %v455
        %465 = vmatpush.bf16.msra.mxu0 %v454
        %466 = vmatpush.bf16.msra.mxu0 %v453
        %467 = vmatpush.bf16.msra.mxu0 %v452
        %468 = vmatpush.bf16.msra.mxu0 %v451
        %469 = vmatpush.bf16.msra.mxu0 %v450
        %470 = vmatpush.bf16.msra.mxu0 %v449
        %471 = vmatpush.bf16.msra.mxu0 %v448
        %472 = vmatmul.bf16.gmra.mxu0 %v379
        %v473 = vpop.f32.mrf.mxu0
        %v474 = vadd.f32 %v414, %v473
        %v475 = vpop.f32.mrf.mxu0
        %v476 = vadd.f32 %v414, %v475
        %477 = vdwg.mxu0
        %v478 = vld [vmem:[%s361] sm:$0x1]
        %v480 = vperm.slane %v478, 0
        %v498 = vunpack.c.l.b16 %v396
        %v499 = vunpack.c.l.b16 %v397
        %v500 = vunpack.c.l.b16 %v398
        %v501 = vunpack.c.l.b16 %v399
        %v502 = vunpack.c.l.b16 %v400
        %v503 = vunpack.c.l.b16 %v401
        %v504 = vunpack.c.l.b16 %v402
        %v505 = vunpack.c.l.b16 %v403
        %v506 = vunpack.c.l.b16 %v404
        %v507 = vunpack.c.l.b16 %v405
        %v508 = vunpack.c.l.b16 %v406
        %v509 = vunpack.c.l.b16 %v407
        %v510 = vunpack.c.l.b16 %v408
        %v511 = vunpack.c.l.b16 %v409
        %v512 = vunpack.c.l.b16 %v410
        %v513 = vunpack.c.l.b16 %v411
        %v514 = vpack.c.b16 %v499, %v498
        %v515 = vpack.c.b16 %v501, %v500
        %v516 = vpack.c.b16 %v503, %v502
        %v517 = vpack.c.b16 %v505, %v504
        %v518 = vpack.c.b16 %v507, %v506
        %v519 = vpack.c.b16 %v509, %v508
        %v520 = vpack.c.b16 %v511, %v510
        %v521 = vpack.c.b16 %v513, %v512
        %530 = vmatpush.bf16.msra.mxu0 %v521
        %531 = vmatpush.bf16.msra.mxu0 %v520
        %532 = vmatpush.bf16.msra.mxu0 %v519
        %533 = vmatpush.bf16.msra.mxu0 %v518
        %534 = vmatpush.bf16.msra.mxu0 %v517
        %535 = vmatpush.bf16.msra.mxu0 %v516
        %536 = vmatpush.bf16.msra.mxu0 %v515
        %537 = vmatpush.bf16.msra.mxu0 %v514
        %538 = vmatmul.bf16.gmra.mxu0 %v379
        %v539 = vpop.f32.mrf.mxu0
        %v540 = vadd.f32 %v480, %v539
        %v541 = vpop.f32.mrf.mxu0
        %v542 = vadd.f32 %v480, %v541
        %543 = vdwg.mxu0
        %v544 = vld [vmem:[%s364] sm:$0x1]
        %v547 = vrot.slane %v540, 1
        %v548 = vrot.slane %v540, 2
        %v549 = vrot.slane %v540, 3
        %v550 = vrot.slane %v540, 4
        %v551 = vrot.slane %v540, 5
        %v552 = vrot.slane %v540, 6
        %v553 = vrot.slane %v540, 7
        %v554 = vrot.slane %v542, 1
        %v555 = vrot.slane %v542, 2
        %v556 = vrot.slane %v542, 3
        %v557 = vrot.slane %v542, 4
        %v558 = vrot.slane %v542, 5
        %v559 = vrot.slane %v542, 6
        %v560 = vrot.slane %v542, 7
        %v561 = vperm.slane %v540, 0
        %v562 = vperm.slane %v547, 0
        %v563 = vperm.slane %v548, 0
        %v564 = vperm.slane %v549, 0
        %v565 = vperm.slane %v550, 0
        %v566 = vperm.slane %v551, 0
        %v567 = vperm.slane %v552, 0
        %v568 = vperm.slane %v553, 0
        %v569 = vperm.slane %v542, 0
        %v570 = vperm.slane %v554, 0
        %v571 = vperm.slane %v555, 0
        %v572 = vperm.slane %v556, 0
        %v573 = vperm.slane %v557, 0
        %v574 = vperm.slane %v558, 0
        %v575 = vperm.slane %v559, 0
        %v576 = vperm.slane %v560, 0
        %v593 = vadd.f32 %v561, %v474
        %v594 = vadd.f32 %v561, %v476
        %v595 = vadd.f32 %v562, %v474
        %v596 = vadd.f32 %v562, %v476
        %v597 = vadd.f32 %v563, %v474
        %v598 = vadd.f32 %v563, %v476
        %v599 = vadd.f32 %v564, %v474
        %v600 = vadd.f32 %v564, %v476
        %v601 = vadd.f32 %v565, %v474
        %v602 = vadd.f32 %v565, %v476
        %v603 = vadd.f32 %v566, %v474
        %v604 = vadd.f32 %v566, %v476
        %v605 = vadd.f32 %v567, %v474
        %v606 = vadd.f32 %v567, %v476
        %v607 = vadd.f32 %v568, %v474
        %v608 = vadd.f32 %v568, %v476
        %v609 = vadd.f32 %v569, %v474
        %v610 = vadd.f32 %v569, %v476
        %v611 = vadd.f32 %v570, %v474
        %v612 = vadd.f32 %v570, %v476
        %v613 = vadd.f32 %v571, %v474
        %v614 = vadd.f32 %v571, %v476
        %v615 = vadd.f32 %v572, %v474
        %v616 = vadd.f32 %v572, %v476
        %v617 = vadd.f32 %v573, %v474
        %v618 = vadd.f32 %v573, %v476
        %v619 = vadd.f32 %v574, %v474
        %v620 = vadd.f32 %v574, %v476
        %v621 = vadd.f32 %v575, %v474
        %v622 = vadd.f32 %v575, %v476
        %v623 = vadd.f32 %v576, %v474
        %v624 = vadd.f32 %v576, %v476
        %vm625 = vcmp.ge.f32.partialorder %v593, 0.0
        %vm626 = vcmp.ge.f32.partialorder %v594, 0.0
        %vm627 = vcmp.ge.f32.partialorder %v595, 0.0
        %vm628 = vcmp.ge.f32.partialorder %v596, 0.0
        %vm629 = vcmp.ge.f32.partialorder %v597, 0.0
        %vm630 = vcmp.ge.f32.partialorder %v598, 0.0
        %vm631 = vcmp.ge.f32.partialorder %v599, 0.0
        %vm632 = vcmp.ge.f32.partialorder %v600, 0.0
        %vm633 = vcmp.ge.f32.partialorder %v601, 0.0
        %vm634 = vcmp.ge.f32.partialorder %v602, 0.0
        %vm635 = vcmp.ge.f32.partialorder %v603, 0.0
        %vm636 = vcmp.ge.f32.partialorder %v604, 0.0
        %vm637 = vcmp.ge.f32.partialorder %v605, 0.0
        %vm638 = vcmp.ge.f32.partialorder %v606, 0.0
        %vm639 = vcmp.ge.f32.partialorder %v607, 0.0
        %vm640 = vcmp.ge.f32.partialorder %v608, 0.0
        %vm641 = vcmp.ge.f32.partialorder %v609, 0.0
        %vm642 = vcmp.ge.f32.partialorder %v610, 0.0
        %vm643 = vcmp.ge.f32.partialorder %v611, 0.0
        %vm644 = vcmp.ge.f32.partialorder %v612, 0.0
        %vm645 = vcmp.ge.f32.partialorder %v613, 0.0
        %vm646 = vcmp.ge.f32.partialorder %v614, 0.0
        %vm647 = vcmp.ge.f32.partialorder %v615, 0.0
        %vm648 = vcmp.ge.f32.partialorder %v616, 0.0
        %vm649 = vcmp.ge.f32.partialorder %v617, 0.0
        %vm650 = vcmp.ge.f32.partialorder %v618, 0.0
        %vm651 = vcmp.ge.f32.partialorder %v619, 0.0
        %vm652 = vcmp.ge.f32.partialorder %v620, 0.0
        %vm653 = vcmp.ge.f32.partialorder %v621, 0.0
        %vm654 = vcmp.ge.f32.partialorder %v622, 0.0
        %vm655 = vcmp.ge.f32.partialorder %v623, 0.0
        %vm656 = vcmp.ge.f32.partialorder %v624, 0.0
        %v657 = vmul.f32 %v593, 0.2
        %v658 = vmul.f32 %v594, 0.2
        %v659 = vmul.f32 %v595, 0.2
        %v660 = vmul.f32 %v596, 0.2
        %v661 = vmul.f32 %v597, 0.2
        %v662 = vmul.f32 %v598, 0.2
        %v663 = vmul.f32 %v599, 0.2
        %v664 = vmul.f32 %v600, 0.2
        %v665 = vmul.f32 %v601, 0.2
        %v666 = vmul.f32 %v602, 0.2
        %v667 = vmul.f32 %v603, 0.2
        %v668 = vmul.f32 %v604, 0.2
        %v669 = vmul.f32 %v605, 0.2
        %v670 = vmul.f32 %v606, 0.2
        %v671 = vmul.f32 %v607, 0.2
        %v672 = vmul.f32 %v608, 0.2
        %v673 = vmul.f32 %v609, 0.2
        %v674 = vmul.f32 %v610, 0.2
        %v675 = vmul.f32 %v611, 0.2
        %v676 = vmul.f32 %v612, 0.2
        %v677 = vmul.f32 %v613, 0.2
        %v678 = vmul.f32 %v614, 0.2
        %v679 = vmul.f32 %v615, 0.2
        %v680 = vmul.f32 %v616, 0.2
        %v681 = vmul.f32 %v617, 0.2
        %v682 = vmul.f32 %v618, 0.2
        %v683 = vmul.f32 %v619, 0.2
        %v684 = vmul.f32 %v620, 0.2
        %v685 = vmul.f32 %v621, 0.2
        %v686 = vmul.f32 %v622, 0.2
        %v687 = vmul.f32 %v623, 0.2
        %v688 = vmul.f32 %v624, 0.2
        %v689 = vsel %vm625, %v593, %v657
        %v690 = vsel %vm626, %v594, %v658
        %v691 = vsel %vm627, %v595, %v659
        %v692 = vsel %vm628, %v596, %v660
        %v693 = vsel %vm629, %v597, %v661
        %v694 = vsel %vm630, %v598, %v662
        %v695 = vsel %vm631, %v599, %v663
        %v696 = vsel %vm632, %v600, %v664
        %v697 = vsel %vm633, %v601, %v665
        %v698 = vsel %vm634, %v602, %v666
        %v699 = vsel %vm635, %v603, %v667
        %v700 = vsel %vm636, %v604, %v668
        %v701 = vsel %vm637, %v605, %v669
        %v702 = vsel %vm638, %v606, %v670
        %v703 = vsel %vm639, %v607, %v671
        %v704 = vsel %vm640, %v608, %v672
        %v705 = vsel %vm641, %v609, %v673
        %v706 = vsel %vm642, %v610, %v674
        %v707 = vsel %vm643, %v611, %v675
        %v708 = vsel %vm644, %v612, %v676
        %v709 = vsel %vm645, %v613, %v677
        %v710 = vsel %vm646, %v614, %v678
        %v711 = vsel %vm647, %v615, %v679
        %v712 = vsel %vm648, %v616, %v680
        %v713 = vsel %vm649, %v617, %v681
        %v714 = vsel %vm650, %v618, %v682
        %v715 = vsel %vm651, %v619, %v683
        %v716 = vsel %vm652, %v620, %v684
        %v717 = vsel %vm653, %v621, %v685
        %v718 = vsel %vm654, %v622, %v686
        %v719 = vsel %vm655, %v623, %v687
        %v720 = vsel %vm656, %v624, %v688
        %v722 = vperm.slane %v544, 0
        %v724 = vmul.f32 %v689, %v722
        %v725 = vmul.f32 %v690, %v722
        %v726 = vmul.f32 %v691, %v722
        %v727 = vmul.f32 %v692, %v722
        %v728 = vmul.f32 %v693, %v722
        %v729 = vmul.f32 %v694, %v722
        %v730 = vmul.f32 %v695, %v722
        %v731 = vmul.f32 %v696, %v722
        %v732 = vmul.f32 %v697, %v722
        %v733 = vmul.f32 %v698, %v722
        %v734 = vmul.f32 %v699, %v722
        %v735 = vmul.f32 %v700, %v722
        %v736 = vmul.f32 %v701, %v722
        %v737 = vmul.f32 %v702, %v722
        %v738 = vmul.f32 %v703, %v722
        %v739 = vmul.f32 %v704, %v722
        %v740 = vmul.f32 %v705, %v722
        %v741 = vmul.f32 %v706, %v722
        %v742 = vmul.f32 %v707, %v722
        %v743 = vmul.f32 %v708, %v722
        %v744 = vmul.f32 %v709, %v722
        %v745 = vmul.f32 %v710, %v722
        %v746 = vmul.f32 %v711, %v722
        %v747 = vmul.f32 %v712, %v722
        %v748 = vmul.f32 %v713, %v722
        %v749 = vmul.f32 %v714, %v722
        %v750 = vmul.f32 %v715, %v722
        %v751 = vmul.f32 %v716, %v722
        %v752 = vmul.f32 %v717, %v722
        %v753 = vmul.f32 %v718, %v722
        %v754 = vmul.f32 %v719, %v722
        %v755 = vmul.f32 %v720, %v722
        %756 = vadd.xlane.f32.xlu0 %v724
        %v757 = vpop.xlane.xlu0 %756
        %758 = vadd.xlane.f32.xlu0 %v725
        %v759 = vpop.xlane.xlu0 %758
        %760 = vadd.xlane.f32.xlu0 %v726
        %v761 = vpop.xlane.xlu0 %760
        %762 = vadd.xlane.f32.xlu0 %v727
        %v763 = vpop.xlane.xlu0 %762
        %764 = vadd.xlane.f32.xlu0 %v728
        %v765 = vpop.xlane.xlu0 %764
        %766 = vadd.xlane.f32.xlu0 %v729
        %v767 = vpop.xlane.xlu0 %766
        %768 = vadd.xlane.f32.xlu0 %v730
        %v769 = vpop.xlane.xlu0 %768
        %770 = vadd.xlane.f32.xlu0 %v731
        %v771 = vpop.xlane.xlu0 %770
        %772 = vadd.xlane.f32.xlu0 %v732
        %v773 = vpop.xlane.xlu0 %772
        %774 = vadd.xlane.f32.xlu0 %v733
        %v775 = vpop.xlane.xlu0 %774
        %776 = vadd.xlane.f32.xlu0 %v734
        %v777 = vpop.xlane.xlu0 %776
        %778 = vadd.xlane.f32.xlu0 %v735
        %v779 = vpop.xlane.xlu0 %778
        %780 = vadd.xlane.f32.xlu0 %v736
        %v781 = vpop.xlane.xlu0 %780
        %782 = vadd.xlane.f32.xlu0 %v737
        %v783 = vpop.xlane.xlu0 %782
        %784 = vadd.xlane.f32.xlu0 %v738
        %v785 = vpop.xlane.xlu0 %784
        %786 = vadd.xlane.f32.xlu0 %v739
        %v787 = vpop.xlane.xlu0 %786
        %788 = vadd.xlane.f32.xlu0 %v740
        %v789 = vpop.xlane.xlu0 %788
        %790 = vadd.xlane.f32.xlu0 %v741
        %v791 = vpop.xlane.xlu0 %790
        %792 = vadd.xlane.f32.xlu0 %v742
        %v793 = vpop.xlane.xlu0 %792
        %794 = vadd.xlane.f32.xlu0 %v743
        %v795 = vpop.xlane.xlu0 %794
        %796 = vadd.xlane.f32.xlu0 %v744
        %v797 = vpop.xlane.xlu0 %796
        %798 = vadd.xlane.f32.xlu0 %v745
        %v799 = vpop.xlane.xlu0 %798
        %800 = vadd.xlane.f32.xlu0 %v746
        %v801 = vpop.xlane.xlu0 %800
        %802 = vadd.xlane.f32.xlu0 %v747
        %v803 = vpop.xlane.xlu0 %802
        %804 = vadd.xlane.f32.xlu0 %v748
        %v805 = vpop.xlane.xlu0 %804
        %806 = vadd.xlane.f32.xlu0 %v749
        %v807 = vpop.xlane.xlu0 %806
        %808 = vadd.xlane.f32.xlu0 %v750
        %v809 = vpop.xlane.xlu0 %808
        %810 = vadd.xlane.f32.xlu0 %v751
        %v811 = vpop.xlane.xlu0 %810
        %812 = vadd.xlane.f32.xlu0 %v752
        %v813 = vpop.xlane.xlu0 %812
        %814 = vadd.xlane.f32.xlu0 %v753
        %v815 = vpop.xlane.xlu0 %814
        %816 = vadd.xlane.f32.xlu0 %v754
        %v817 = vpop.xlane.xlu0 %816
        %818 = vadd.xlane.f32.xlu0 %v755
        %v819 = vpop.xlane.xlu0 %818
        %v820 = vld [vmem:[%s1] sm:$0x3]
        %v821 = vld [vmem:[%s1 + $0x2] sm:$0x3]
        %v822 = vunpack.c.0.s8 %v820
        %v823 = vunpack.c.0.s8 %v821
        %v824 = vcvt.s32.f32 %v822
        %v825 = vcvt.s32.f32 %v823
        %vm826 = vcmp.gt.f32.partialorder %v824, 0.0
        %vm827 = vcmp.gt.f32.partialorder %v825, 0.0
        %v860 = vlaneseq
        %v861 = vand.u32 %v860, 127
        %v862 = vperm.slane %v757, %v861
        %v863 = vadd.s32 %v861, 4294967288
        %v864 = vperm.slane %v759, %v863
        %vm865 = vcmask 130112
        %v866 = vsel %vm865, %v864, %v862
        %v867 = vperm.slane %v761, %v861
        %v868 = vperm.slane %v763, %v863
        %v869 = vsel %vm865, %v868, %v867
        %v870 = vperm.slane %v765, %v861
        %v871 = vperm.slane %v767, %v863
        %v872 = vsel %vm865, %v871, %v870
        %v873 = vperm.slane %v769, %v861
        %v874 = vperm.slane %v771, %v863
        %v875 = vsel %vm865, %v874, %v873
        %v876 = vperm.slane %v773, %v861
        %v877 = vperm.slane %v775, %v863
        %v878 = vsel %vm865, %v877, %v876
        %v879 = vperm.slane %v777, %v861
        %v880 = vperm.slane %v779, %v863
        %v881 = vsel %vm865, %v880, %v879
        %v882 = vperm.slane %v781, %v861
        %v883 = vperm.slane %v783, %v863
        %v884 = vsel %vm865, %v883, %v882
        %v885 = vperm.slane %v785, %v861
        %v886 = vperm.slane %v787, %v863
        %v887 = vsel %vm865, %v886, %v885
        %v888 = vperm.slane %v789, %v861
        %v889 = vperm.slane %v791, %v863
        %v890 = vsel %vm865, %v889, %v888
        %v891 = vperm.slane %v793, %v861
        %v892 = vperm.slane %v795, %v863
        %v893 = vsel %vm865, %v892, %v891
        %v894 = vperm.slane %v797, %v861
        %v895 = vperm.slane %v799, %v863
        %v896 = vsel %vm865, %v895, %v894
        %v897 = vperm.slane %v801, %v861
        %v898 = vperm.slane %v803, %v863
        %v899 = vsel %vm865, %v898, %v897
        %v900 = vperm.slane %v805, %v861
        %v901 = vperm.slane %v807, %v863
        %v902 = vsel %vm865, %v901, %v900
        %v903 = vperm.slane %v809, %v861
        %v904 = vperm.slane %v811, %v863
        %v905 = vsel %vm865, %v904, %v903
        %v906 = vperm.slane %v813, %v861
        %v907 = vperm.slane %v815, %v863
        %v908 = vsel %vm865, %v907, %v906
        %v909 = vperm.slane %v817, %v861
        %v910 = vperm.slane %v819, %v863
        %v911 = vsel %vm865, %v910, %v909
        %vm912 = vcmask 1041409
        %v913 = vsel %vm912, %v869, %v866
        %vm914 = vcmask 1042434
        %v915 = vsel %vm914, %v872, %v913
        %vm916 = vcmask 1043459
        %v917 = vsel %vm916, %v875, %v915
        %vm918 = vcmask 1044484
        %v919 = vsel %vm918, %v878, %v917
        %vm920 = vcmask 1045509
        %v921 = vsel %vm920, %v881, %v919
        %vm922 = vcmask 1046534
        %v923 = vsel %vm922, %v884, %v921
        %vm924 = vcmask 1047559
        %v925 = vsel %vm924, %v887, %v923
        %v926 = vsel %vm912, %v893, %v890
        %v927 = vsel %vm914, %v896, %v926
        %v928 = vsel %vm916, %v899, %v927
        %v929 = vsel %vm918, %v902, %v928
        %v930 = vsel %vm920, %v905, %v929
        %v931 = vsel %vm922, %v908, %v930
        %v932 = vsel %vm924, %v911, %v931
        %v935 = vsel %vm826, %v925, -1e+30
        %v936 = vsel %vm827, %v932, -1e+30
        %vm937 = vcmask 130048
        %v938 = vsel %vm937, %v935, -inf
        %939 = vmax.xlane.f32.xlu0 %v938
        %v940 = vpop.xlane.xlu0 %939
        %v941 = vsel %vm937, %v936, -inf
        %942 = vmax.xlane.f32.xlu0 %v941
        %v943 = vpop.xlane.xlu0 %942
        %v944 = vsub.f32 %v935, %v940
        %v945 = vsub.f32 %v936, %v943
        %v946 = vmul.f32 %v944, 1.442695
        %v947 = vpow.pop %v946
        %v948 = vmul.f32 %v945, 1.442695
        %v949 = vpow.pop %v948
        %v950 = vsel %vm826, %v947, 0.0
        %v951 = vsel %vm827, %v949, 0.0
        %v952 = vsel %vm937, %v950, 0.0
        %953 = vadd.xlane.f32.xlu0 %v952
        %v954 = vpop.xlane.xlu0 %953
        %v955 = vsel %vm937, %v951, 0.0
        %956 = vadd.xlane.f32.xlu0 %v955
        %v957 = vpop.xlane.xlu0 %956
        %v958 = vrcp.pop %v954
        %v959 = vrcp.pop %v957
        %v960 = vmul.f32 %v950, %v958
        %v961 = vmul.f32 %v951, %v959
        %v962 = vpack.c.bf16 %v961, %v960
        %v963 = vpack.c.bf16 %v476, %v474
        %v964 = vld [vmem:[%s367] sm:$0x1]
        %v966 = vperm.slane %v964, 0
        %v969 = vsel %vm937, %v962, 0
        %971 = vmatpush.bf16.msra.mxu0 0
        %972 = vmatpush.bf16.msra.mxu0 0
        %973 = vmatpush.bf16.msra.mxu0 0
        %974 = vmatpush.bf16.msra.mxu0 0
        %975 = vmatpush.bf16.msra.mxu0 0
        %976 = vmatpush.bf16.msra.mxu0 0
        %977 = vmatpush.bf16.msra.mxu0 0
        %978 = vmatpush.bf16.msra.mxu0 %v963
        %979 = vmatmul.bf16.gmra.mxu0 %v969
        %v980 = vpop.f32.mrf.mxu0
        %v981 = vadd.f32 %v966, %v980
        %v982 = vpop.f32.mrf.mxu0
        %v983 = vadd.f32 %v966, %v982
        %984 = vdwg.mxu0
        %v985 = vmax.f32 %v981, 0.0
        %v986 = vmax.f32 %v983, 0.0
        %987 = vst [vmem:[#allocation2] sm:$0xff] %v985
        %988 = vst [vmem:[#allocation2 + $0x8] sm:$0xff] %v986
        %p989 = scmp.eq.s32.totalorder %s20, 2
        // Predicated region
        $region57: #{gat_conv_embedding_pallas.1} parent=51 // pred_check
          %p990 = pneg %p989
        $region58: #{gat_conv_embedding_pallas.1} parent=51 // pred_check_branch
          %992 = sbr.rel (%p990) target = $region60
        $region59: #{gat_conv_embedding_pallas.1} parent=51 // pred_region
          %993 = vst [vmem:[#allocation3] sm:$0xff] %v985
          %994 = vst [vmem:[#allocation3 + $0x8] sm:$0xff] %v986
        $region60: #{gat_conv_embedding_pallas.1} parent=51 // pred_fallthru
          _
        // Predicated region
        $region61: #{gat_conv_embedding_pallas.1} parent=51 // pred_check
          %p995 = pneg %p231
        $region62: #{gat_conv_embedding_pallas.1} parent=51 // pred_check_branch
          %997 = sbr.rel (%p995) target = $region64
        $region63: #{gat_conv_embedding_pallas.1} parent=51 // pred_region
          %999 = vsyncadd [#allocation4], 0
          %s1000 = sshll.u32 [#allocation3], 4
          %s1001 = int_to_ptr.vmem [resolvable:$true] %s1000
          %s1002 = sshll.u32 %s8, 4
          %s1003 = int_to_ptr.hbm [resolvable:$true] %s1002
          %1008 = dma.vmem_to_hbm [thread:$0]  %s1001, 256, %s1003, [#allocation4], 128, 128, 8
        $region64: #{gat_conv_embedding_pallas.1} parent=51 // pred_fallthru
          _
        // Predicated region
        $region65: #{gat_conv_embedding_pallas.1} parent=51 // pred_check
          %p1009 = pneg %p231
        $region66: #{gat_conv_embedding_pallas.1} parent=51 // pred_check_branch
          %1011 = sbr.rel (%p1009) target = $region68
        $region67: #{gat_conv_embedding_pallas.1} parent=51 // pred_region
          %1013 = dma.done [#allocation4], 256
        $region68: #{gat_conv_embedding_pallas.1} parent=51 // pred_fallthru
          _
      $region52: #{gat_conv_embedding_pallas.1} parent=5 // pred_fallthru
        _
      %p1014 = scmp.le.s32.totalorder 2, %s15
      // Predicated region
      $region69: #{gat_conv_embedding_pallas.1} parent=5 // pred_check
        %p1015 = pneg %p1014
      $region70: #{gat_conv_embedding_pallas.1} parent=5 // pred_check_branch
        %1017 = sbr.rel (%p1015) target = $region72
      $region71: #{gat_conv_embedding_pallas.1} parent=5 // pred_region
        %s1018 = ssub.s32 %s15, 2
      $region72: #{gat_conv_embedding_pallas.1} parent=5 // pred_fallthru
        _
    $region6: #{gat_conv_embedding_pallas.1} parent=1 // loop_footer
      %s19 = sadd.s32 1, %s15
    $region7: #{gat_conv_embedding_pallas.1} parent=1 // loop_footer_branch
      %14 = sbr.rel target = $region3
    $region8: #{gat_conv_embedding_pallas.1} parent=1 // loop_exit
      _
    %1019 = vsyncpa [#allocation4], 1
    %s1020 = scalar_lea.sflag [#allocation4], 1
    %1021 = vsyncpa %s1020, 1

</llo_original>
